<compile_context>
chip_gen: v5e
topology: v5e:2x2
jax: 0.10.0
libtpu: 0.0.40
codegen_flags: <defaults>
</compile_context>

<pallas_src>
from functools import partial

import numpy as np
import jax
import jax.numpy as jnp
from jax.experimental import pallas as pl
from jax.experimental.pallas import tpu as pltpu


# ---------------------------------------------------------------------------
# kernel
# ---------------------------------------------------------------------------
def _phase_conv_kernel(x_ref, w_ref, b_ref, o_ref, *, hb, W, offsets, pr_top,
                       nrb):
    """One (batch, row-block) grid step of the phase-decomposed transposed conv.

    x_ref: (Cin, Hp*W)       zero-padded, row-flattened image (VMEM resident)
    w_ref: (T, 4*Cout, Cin)  per-tap combined weights, rows ordered (rp, cp, Cout)
    b_ref: (4*Cout, 1)       bias tiled over the 4 output phases
    o_ref: (4*Cout, hb*W)    phase-stacked output block (pixels on lanes)
    """
    hbW = hb * W
    # First input row of this block.  For the common single-row-block case the
    # base is a python constant -> every tap slice below is fully static.
    base = 0 if nrb == 1 else pl.program_id(1) * hb
    col = jax.lax.broadcasted_iota(jnp.int32, (1, hbW), 1) % W

    acc = jnp.zeros(o_ref.shape, jnp.float32)
    for t, (dh, dw) in enumerate(offsets):            # static, unrolled
        start = (base + dh + pr_top) * W + dw
        slab = x_ref[:, pl.ds(start, hbW)]            # (Cin, hb*W)
        if dw > 0:      # zero columns that wrapped into the next image row
            slab = jnp.where(col < W - dw, slab, 0.0)
        elif dw < 0:    # ... or into the previous one
            slab = jnp.where(col >= -dw, slab, 0.0)
        acc = acc + jnp.dot(w_ref[t], slab, preferred_element_type=jnp.float32)

    acc = acc + b_ref[...]
    acc = jnp.maximum(acc, 0.0)                       # torch.relu
    o_ref[...] = acc.astype(o_ref.dtype)


# ---------------------------------------------------------------------------
# wrapper helpers
# ---------------------------------------------------------------------------
def _phase_offsets(K, padding):
    """Range of input-row/col offsets used by the two output parities."""
    dvals = sorted({(rp + padding - k) // 2
                    for rp in (0, 1) for k in range(K)
                    if (rp + padding - k) % 2 == 0})
    return dvals[0], dvals[-1]


def _combined_weights(weight, bias, padding, dmin, dmax):
    """w_tap[t=(dh,dw), row=(rp,cp,Cout), Cin] built with one vectorized gather.

    out[co, 2h+rp, 2w+cp] = b[co]
        + sum_{ci,dh,dw} x[ci, h+dh, w+dw] * weight[ci, co, rp+p-2dh, cp+p-2dw]
    (taps whose kernel index falls outside [0, K) get zero weight).
    """
    Cin, Cout, K, _ = weight.shape
    D = dmax - dmin + 1
    d = np.arange(dmin, dmax + 1)
    kidx = np.arange(2)[:, None] + padding - 2 * d[None, :]      # (2, D)
    valid = (kidx >= 0) & (kidx < K)
    kc = np.clip(kidx, 0, K - 1)
    wk = weight[:, :, kc, :][:, :, :, :, kc]        # (Cin, Cout, 2, D, 2, D)
    mask = valid[:, :, None, None] & valid[None, None, :, :]     # (2, D, 2, D)
    wt = wk * jnp.asarray(mask, weight.dtype)[None, None]
    # (Cin, Cout, rp, dh, cp, dw) -> (dh, dw, rp, cp, Cout, Cin) -> (T, 4*Cout, Cin)
    w_tap = jnp.transpose(wt, (3, 5, 2, 4, 1, 0)).reshape(D * D, 4 * Cout, Cin)
    b_col = jnp.tile(bias, 4).reshape(4 * Cout, 1)
    return w_tap, b_col


def _vmem_capacity_bytes():
    try:
        return int(pltpu.get_tpu_info().vmem_capacity_bytes)
    except Exception:
        return 64 << 20          # conservative default (v7x per-TensorCore)


def _pick_row_block(N, H, W, Cin, Cout, T, HpW):
    """Largest row block that fits the generation-aware VMEM budget, keeping the
    output lane dim a multiple of 128 (or the full extent) and the grid >= 2
    steps so both v7x TensorCores get work."""
    elt = 4
    cap = _vmem_capacity_bytes()
    budget = (8 << 20) if cap <= (64 << 20) else (16 << 20)
    # resident image + weights/bias (double-buffered by the pipeline)
    fixed = 2 * elt * (Cin * HpW + T * 4 * Cout * Cin + 4 * Cout)
    assert fixed < budget, (
        "input image too large to keep VMEM-resident; "
        "TODO(synk): add a halo-DMA row-tiled path for very large images")
    # per output row: double-buffered out block + slab/accumulator working set
    per_row = elt * W * (2 * 4 * Cout + Cin + 8 * Cout)
    cands = [hb for hb in range(H, 0, -1)
             if H % hb == 0 and (hb == H or (hb * W) % 128 == 0)]
    hb = next((c for c in cands if fixed + per_row * c <= budget), cands[-1])
    if N * (H // hb) < 2:                       # v7x: give both cores work
        smaller = [c for c in cands if c < hb]
        if smaller:
            hb = smaller[0]
    need = fixed + per_row * hb
    vmem_limit = int(min(cap - (4 << 20), max(32 << 20, need + (8 << 20))))
    return hb, vmem_limit


# ---------------------------------------------------------------------------
# forward pass of TransposedConvLayer (ConvTranspose2d stride=2 + bias + relu)
# ---------------------------------------------------------------------------
def transposed_conv_layer(x_nchw, weight, bias, *, kernel_size, padding=0,
                          output_padding=1):
    stride = 2
    N, Cin, H, W = x_nchw.shape
    Cin_w, Cout, K, K2 = weight.shape
    assert Cin == Cin_w and K == K2 == kernel_size
    assert output_padding == 1 and output_padding < stride
    # Phase decomposition covers the size-doubling configuration the module is
    # built around (Ho == 2*H  <=>  kernel_size == 2*padding + 1).
    assert K == 2 * padding + 1, "phase kernel assumes Ho == 2*H"
    Ho, Wo = stride * H, stride * W

    dmin, dmax = _phase_offsets(K, padding)
    D = dmax - dmin + 1
    T = D * D
    offsets = tuple((dh, dw) for dh in range(dmin, dmax + 1)
                    for dw in range(dmin, dmax + 1))
    assert dmax <= W and -dmin <= W

    # Once-padded, row-flattened image (the only wrapper-side input pass).
    pr_top = -dmin + (1 if dmin < 0 else 0)
    pr_bot = dmax + 1
    Hp = H + pr_top + pr_bot
    x_flat = jnp.pad(x_nchw, ((0, 0), (0, 0), (pr_top, pr_bot), (0, 0))
                     ).reshape(N, Cin, Hp * W)

    w_tap, b_col = _combined_weights(weight, bias, padding, dmin, dmax)

    hb, vmem_limit = _pick_row_block(N, H, W, Cin, Cout, T, Hp * W)
    nrb = H // hb
    hbW = hb * W

    kernel = partial(_phase_conv_kernel, hb=hb, W=W, offsets=offsets,
                     pr_top=pr_top, nrb=nrb)
    itemsize = x_flat.dtype.itemsize
    cost = pl.CostEstimate(
        flops=2 * N * (4 * Cout) * (T * Cin) * (H * W),
        bytes_accessed=(x_flat.size + w_tap.size + b_col.size
                        + N * 4 * Cout * H * W) * itemsize,
        transcendentals=0)

    out_flat = pl.pallas_call(
        kernel,
        out_shape=jax.ShapeDtypeStruct((N, 4 * Cout, H * W), x_nchw.dtype),
        grid_spec=pltpu.PrefetchScalarGridSpec(
            num_scalar_prefetch=0,
            grid=(N, nrb),
            in_specs=[
                # full padded image, resident across the row-block axis
                pl.BlockSpec((pl.Squeezed(), Cin, Hp * W),
                             lambda n, r: (n, 0, 0)),
                pl.BlockSpec((T, 4 * Cout, Cin), lambda n, r: (0, 0, 0)),
                pl.BlockSpec((4 * Cout, 1), lambda n, r: (0, 0)),
            ],
            out_specs=pl.BlockSpec((pl.Squeezed(), 4 * Cout, hbW),
                                   lambda n, r: (n, 0, r)),
        ),
        compiler_params=pltpu.CompilerParams(
            dimension_semantics=("parallel", "parallel"),
            vmem_limit_bytes=vmem_limit),
        cost_estimate=cost,
    )(x_flat, w_tap, b_col)

    # De-interleave the 4 phases into NCHW (single fused XLA transpose).
    # TODO(synk): fold this interleave into the kernel for large-W layers.
    out = out_flat.reshape(N, 2, 2, Cout, H, W)
    out = jnp.transpose(out, (0, 3, 4, 1, 5, 2)).reshape(N, Cout, Ho, Wo)
    return out


# ---------------------------------------------------------------------------
# pure-JAX reference for ConvTranspose2d(stride=2) + bias + relu
# ---------------------------------------------------------------------------
def _reference(x_nchw, weight, bias, *, kernel_size, padding, output_padding):
    K = kernel_size
    stride = 2
    w_flip = jnp.transpose(weight[:, :, ::-1, ::-1], (1, 0, 2, 3))  # (Cout,Cin,K,K)
    pb = K - 1 - padding
    pa = K - 1 - padding + output_padding
    out = jax.lax.conv_general_dilated(
        x_nchw, w_flip, window_strides=(1, 1),
        padding=((pb, pa), (pb, pa)),
        lhs_dilation=(stride, stride),
        dimension_numbers=('NCHW', 'OIHW', 'NCHW'))
    out = out + bias[None, :, None, None]
    return jnp.maximum(out, 0.0)


if __name__ == "__main__":
    # Module config: TransposedConvLayer(4, 8, kernel_size=3, padding=1,
    #                                    activation='relu', norm=None)
    in_channels, out_channels, kernel_size, padding, output_padding = 4, 8, 3, 1, 1

    key = jax.random.PRNGKey(0)
    kx, kw, kb = jax.random.split(key, 3)

    x = jax.random.normal(kx, (2, in_channels, 16, 16), dtype=jnp.float32)
    # nn.ConvTranspose2d weight shape: (in_channels, out_channels, kH, kW)
    weight = 0.1 * jax.random.normal(
        kw, (in_channels, out_channels, kernel_size, kernel_size),
        dtype=jnp.float32)
    bias = 0.1 * jax.random.normal(kb, (out_channels,), dtype=jnp.float32)

    out = transposed_conv_layer(x, weight, bias, kernel_size=kernel_size,
                                padding=padding, output_padding=output_padding)
    out = jax.block_until_ready(out)

    ref = _reference(x, weight, bias, kernel_size=kernel_size,
                     padding=padding, output_padding=output_padding)
    assert out.shape == (2, out_channels, 32, 32)
    assert jnp.allclose(out, ref, atol=1e-4, rtol=1e-4)

    # TODO(synk): norm == 'BN' / 'IN' branches are not instantiated here (module
    # default norm=None), so no norm layer is implemented.
    # TODO(synk): optional bf16 input feed (halves input HBM bytes) left out to
    # keep f32 numerics identical to the PyTorch module.
    print("KERNEL_OK")
</pallas_src>

<mosaic_0001>
module attributes {stable_mosaic.version = 11 : i64} {
  func.func @_phase_conv_kernel(%arg0: i32, %arg1: i32, %arg2: memref<1x4x288xf32, #tpu.memory_space<vmem>>, %arg3: memref<4x32x4xf32, #tpu.memory_space<vmem>>, %arg4: memref<32x1xf32, #tpu.memory_space<vmem>>, %arg5: memref<1x32x256xf32, #tpu.memory_space<vmem>>) attributes {dimension_semantics = [#tpu.dimension_semantics<parallel>, #tpu.dimension_semantics<parallel>], iteration_bounds = array<i64: 2, 1>, scalar_prefetch = 0 : i64, scratch_operands = 0 : i64, tpu.core_type = #tpu.core_type<tc>, window_params = [{transform_indices = @transform_0, window_bounds = array<i64: 1, 4, 288>}, {pipeline_mode = #tpu.pipeline_mode<synchronous>, transform_indices = @transform_1, window_bounds = array<i64: 4, 32, 4>}, {pipeline_mode = #tpu.pipeline_mode<synchronous>, transform_indices = @transform_2, window_bounds = array<i64: 32, 1>}, {transform_indices = @transform_3, window_bounds = array<i64: 1, 32, 256>}]} {
    %0 = tpu.iota {dimensions = array<i32: 1>} : vector<1x256xi32>
    %c16_i32 = arith.constant 16 : i32
    %c0_i32 = arith.constant 0 : i32
    %1 = arith.cmpi eq, %c16_i32, %c0_i32 : i32
    %c1_i32 = arith.constant 1 : i32
    %2 = arith.select %1, %c1_i32, %c16_i32 : i32
    %3 = vector.broadcast %2 : i32 to vector<1x256xi32>
    %4 = arith.remsi %0, %3 : vector<1x256xi32>
    %c0_i32_0 = arith.constant 0 : i32
    %5 = vector.broadcast %c0_i32_0 : i32 to vector<1x256xi32>
    %6 = arith.cmpi ne, %4, %5 : vector<1x256xi32>
    %c0_i32_1 = arith.constant 0 : i32
    %7 = vector.broadcast %c0_i32_1 : i32 to vector<1x256xi32>
    %8 = arith.cmpi slt, %4, %7 : vector<1x256xi32>
    %c0_i32_2 = arith.constant 0 : i32
    %9 = arith.cmpi slt, %2, %c0_i32_2 : i32
    %10 = vector.broadcast %9 : i1 to vector<1x256xi1>
    %11 = vector.broadcast %10 : vector<1x256xi1> to vector<1x256xi1>
    %12 = arith.xori %8, %11 : vector<1x256xi1>
    %13 = arith.andi %12, %6 : vector<1x256xi1>
    %14 = vector.broadcast %2 : i32 to vector<1x256xi32>
    %15 = arith.addi %4, %14 : vector<1x256xi32>
    %16 = arith.select %13, %15, %4 : vector<1x256xi1>, vector<1x256xi32>
    %cst = arith.constant 0.000000e+00 : f32
    %17 = vector.broadcast %cst : f32 to vector<32x256xf32>
    %c0 = arith.constant 0 : index
    %c0_3 = arith.constant 0 : index
    %c0_4 = arith.constant 0 : index
    %18 = vector.load %arg2[%c0, %c0_3, %c0_4] : memref<1x4x288xf32, #tpu.memory_space<vmem>>, vector<1x4x256xf32>
    %19 = vector.shape_cast %18 : vector<1x4x256xf32> to vector<4x256xf32>
    %c0_5 = arith.constant 0 : index
    %c0_6 = arith.constant 0 : index
    %c0_7 = arith.constant 0 : index
    %20 = vector.load %arg3[%c0_5, %c0_6, %c0_7] : memref<4x32x4xf32, #tpu.memory_space<vmem>>, vector<1x32x4xf32>
    %21 = vector.shape_cast %20 : vector<1x32x4xf32> to vector<32x4xf32>
    %cst_8 = arith.constant dense<0.000000e+00> : vector<32x256xf32>
    %22 = tpu.matmul %21, %19, %cst_8 {dimension_numbers = #tpu.dot_dimension_numbers<[1], [0], [0], [1], [0, 0, 1, 1], [], []>} : vector<32x4xf32>, vector<4x256xf32>, vector<32x256xf32> -> vector<32x256xf32>
    %23 = arith.addf %17, %22 : vector<32x256xf32>
    %c0_9 = arith.constant 0 : index
    %c0_10 = arith.constant 0 : index
    %c1 = arith.constant 1 : index
    %24 = vector.load %arg2[%c0_9, %c0_10, %c1] : memref<1x4x288xf32, #tpu.memory_space<vmem>>, vector<1x4x256xf32>
    %25 = vector.shape_cast %24 : vector<1x4x256xf32> to vector<4x256xf32>
    %c15_i32 = arith.constant 15 : i32
    %26 = vector.broadcast %c15_i32 : i32 to vector<1x256xi32>
    %27 = arith.cmpi slt, %16, %26 : vector<1x256xi32>
    %cst_11 = arith.constant 0.000000e+00 : f32
    %28 = vector.shape_cast %27 : vector<1x256xi1> to vector<1x256xi1>
    %29 = vector.broadcast %28 : vector<1x256xi1> to vector<4x256xi1>
    %30 = vector.broadcast %cst_11 : f32 to vector<4x256xf32>
    %31 = arith.select %29, %25, %30 : vector<4x256xi1>, vector<4x256xf32>
    %c1_12 = arith.constant 1 : index
    %c0_13 = arith.constant 0 : index
    %c0_14 = arith.constant 0 : index
    %32 = vector.load %arg3[%c1_12, %c0_13, %c0_14] : memref<4x32x4xf32, #tpu.memory_space<vmem>>, vector<1x32x4xf32>
    %33 = vector.shape_cast %32 : vector<1x32x4xf32> to vector<32x4xf32>
    %cst_15 = arith.constant dense<0.000000e+00> : vector<32x256xf32>
    %34 = tpu.matmul %33, %31, %cst_15 {dimension_numbers = #tpu.dot_dimension_numbers<[1], [0], [0], [1], [0, 0, 1, 1], [], []>} : vector<32x4xf32>, vector<4x256xf32>, vector<32x256xf32> -> vector<32x256xf32>
    %35 = arith.addf %23, %34 : vector<32x256xf32>
    %c0_16 = arith.constant 0 : index
    %c0_17 = arith.constant 0 : index
    %c16 = arith.constant 16 : index
    %36 = vector.load %arg2[%c0_16, %c0_17, %c16] : memref<1x4x288xf32, #tpu.memory_space<vmem>>, vector<1x4x256xf32>
    %37 = vector.shape_cast %36 : vector<1x4x256xf32> to vector<4x256xf32>
    %c2 = arith.constant 2 : index
    %c0_18 = arith.constant 0 : index
    %c0_19 = arith.constant 0 : index
    %38 = vector.load %arg3[%c2, %c0_18, %c0_19] : memref<4x32x4xf32, #tpu.memory_space<vmem>>, vector<1x32x4xf32>
    %39 = vector.shape_cast %38 : vector<1x32x4xf32> to vector<32x4xf32>
    %cst_20 = arith.constant dense<0.000000e+00> : vector<32x256xf32>
    %40 = tpu.matmul %39, %37, %cst_20 {dimension_numbers = #tpu.dot_dimension_numbers<[1], [0], [0], [1], [0, 0, 1, 1], [], []>} : vector<32x4xf32>, vector<4x256xf32>, vector<32x256xf32> -> vector<32x256xf32>
    %41 = arith.addf %35, %40 : vector<32x256xf32>
    %c0_21 = arith.constant 0 : index
    %c0_22 = arith.constant 0 : index
    %c17 = arith.constant 17 : index
    %42 = vector.load %arg2[%c0_21, %c0_22, %c17] : memref<1x4x288xf32, #tpu.memory_space<vmem>>, vector<1x4x256xf32>
    %43 = vector.shape_cast %42 : vector<1x4x256xf32> to vector<4x256xf32>
    %c15_i32_23 = arith.constant 15 : i32
    %44 = vector.broadcast %c15_i32_23 : i32 to vector<1x256xi32>
    %45 = arith.cmpi slt, %16, %44 : vector<1x256xi32>
    %cst_24 = arith.constant 0.000000e+00 : f32
    %46 = vector.shape_cast %45 : vector<1x256xi1> to vector<1x256xi1>
    %47 = vector.broadcast %46 : vector<1x256xi1> to vector<4x256xi1>
    %48 = vector.broadcast %cst_24 : f32 to vector<4x256xf32>
    %49 = arith.select %47, %43, %48 : vector<4x256xi1>, vector<4x256xf32>
    %c3 = arith.constant 3 : index
    %c0_25 = arith.constant 0 : index
    %c0_26 = arith.constant 0 : index
    %50 = vector.load %arg3[%c3, %c0_25, %c0_26] : memref<4x32x4xf32, #tpu.memory_space<vmem>>, vector<1x32x4xf32>
    %51 = vector.shape_cast %50 : vector<1x32x4xf32> to vector<32x4xf32>
    %cst_27 = arith.constant dense<0.000000e+00> : vector<32x256xf32>
    %52 = tpu.matmul %51, %49, %cst_27 {dimension_numbers = #tpu.dot_dimension_numbers<[1], [0], [0], [1], [0, 0, 1, 1], [], []>} : vector<32x4xf32>, vector<4x256xf32>, vector<32x256xf32> -> vector<32x256xf32>
    %53 = arith.addf %41, %52 : vector<32x256xf32>
    %c0_28 = arith.constant 0 : index
    %c0_29 = arith.constant 0 : index
    %54 = vector.load %arg4[%c0_28, %c0_29] : memref<32x1xf32, #tpu.memory_space<vmem>>, vector<32x1xf32>
    %55 = vector.broadcast %54 : vector<32x1xf32> to vector<32x256xf32>
    %56 = arith.addf %53, %55 : vector<32x256xf32>
    %cst_30 = arith.constant 0.000000e+00 : f32
    %57 = vector.broadcast %cst_30 : f32 to vector<32x256xf32>
    %58 = arith.maximumf %56, %57 : vector<32x256xf32>
    %c0_31 = arith.constant 0 : index
    %c0_32 = arith.constant 0 : index
    %c0_33 = arith.constant 0 : index
    %59 = vector.load %arg5[%c0_31, %c0_32, %c0_33] : memref<1x32x256xf32, #tpu.memory_space<vmem>>, vector<1x32x256xf32>
    %60 = vector.shape_cast %59 : vector<1x32x256xf32> to vector<32x256xf32>
    %61 = vector.shape_cast %58 : vector<32x256xf32> to vector<1x32x256xf32>
    tpu.vector_store %arg5[%c0_31, %c0_32, %c0_33], %61 {strides = array<i32>} : memref<1x32x256xf32, #tpu.memory_space<vmem>>, vector<1x32x256xf32>,
    return
  }
  func.func @transform_0(%arg0: i32, %arg1: i32) -> (i32, i32, i32) {
    %c0_i32 = arith.constant 0 : i32
    %c0_i32_0 = arith.constant 0 : i32
    %c0_i32_1 = arith.constant 0 : i32
    return %arg0, %c0_i32, %c0_i32_0 : i32, i32, i32
  }
  func.func @transform_1(%arg0: i32, %arg1: i32) -> (i32, i32, i32) {
    %c0_i32 = arith.constant 0 : i32
    %c0_i32_0 = arith.constant 0 : i32
    %c0_i32_1 = arith.constant 0 : i32
    %c0_i32_2 = arith.constant 0 : i32
    return %c0_i32, %c0_i32_0, %c0_i32_1 : i32, i32, i32
  }
  func.func @transform_2(%arg0: i32, %arg1: i32) -> (i32, i32) {
    %c0_i32 = arith.constant 0 : i32
    %c0_i32_0 = arith.constant 0 : i32
    %c0_i32_1 = arith.constant 0 : i32
    return %c0_i32, %c0_i32_0 : i32, i32
  }
  func.func @transform_3(%arg0: i32, %arg1: i32) -> (i32, i32, i32) {
    %c0_i32 = arith.constant 0 : i32
    %c0_i32_0 = arith.constant 0 : i32
    return %arg0, %c0_i32, %arg1 : i32, i32, i32
  }
}

</mosaic_0001>

<llo_original>
// kernel: tpu_custom_call.1
$region0: #{tpu_custom_call.1}
  #allocation0 [shape = 'u32[]', space=smem, size = 0x4, offset = 0x4, fixed_abs, tag = 'smem constant byte address 0x4 - core index']
  #allocation1 [shape = 'u32[72,128]{1,0:T(1,128)}', space=vmem, size = 0x9000, scoped, tag = 'internal scratch']
  %s0 = inlined_call_operand.vmem [shape: f32[2,4,288], index: 0, kind: input, shape index: {}]
  %s1 = inlined_call_operand.vmem [shape: f32[4,32,4], index: 1, kind: input, shape index: {}]
  %s2 = inlined_call_operand.vmem [shape: f32[32,1], index: 2, kind: input, shape index: {}]
  %s3 = inlined_call_operand.hbm [shape: f32[2,32,256], index: 3, kind: output, shape index: {}]
  %s4 = sld [smem:[#allocation0]]
  $region45: #{tpu_custom_call.1} parent=0
    _
  %s6 = ssub.s32 1, %s4
  %s7 = scalar_select 0, %s6, %s4
  $region1: #{tpu_custom_call.1} parent=0
    #allocation2 [shape = 'u8[65536]{0}', space=vmem, size = 0x10000, scoped, tag = 'output window, operand 0']
    #allocation3 [shape = 's32[2]{0}', space=sflag, size = 0x8, scoped, tag = 'scoped memory for tpu_custom_call.1']
    %8 = vsyncpa [#allocation3], 0
    %s9 = scalar_lea.sflag [#allocation3], 1
    %10 = vsyncpa %s9, 0
    loop: start=0, step=1, limit=4
    $region2: #{tpu_custom_call.1} parent=1 // loop_pre_header
      _
    $region3: #{tpu_custom_call.1} parent=1 // loop_header
      %s12 = sphi 0, %s16
      %p13 = scmp.ge.s32.totalorder %s12, 4
      %s19 = sphi 0, %s31
      %s20 = sphi 0, %s27
      %s21 = sphi 0, %s19
      %s22 = sphi 0, %s20
      %s23 = sphi 0, %s21
      %s24 = sphi 0, %s22
      %s34 = sphi 0, %s36
      %s37 = sphi 0, %s34
      %s38 = sphi 0, %s37
      %s54 = sphi 0, %s38
      %s58 = sphi 0, %s58
      %s60 = sphi 0, %s58
      %s61 = sphi 0, %s60
      %s75 = sphi 0, %s61
      %s79 = sphi 0, %s79
      %s81 = sphi 0, %s79
      %s82 = sphi 0, %s81
      %s96 = sphi 0, %s82
      %s104 = sphi 0, %s106
      %s107 = sphi 0, %s104
      %s108 = sphi 0, %s107
      %s124 = sphi 0, %s108
    $region4: #{tpu_custom_call.1} parent=1 // loop_header_branch
      %15 = sbr.rel (%p13) target = $region8
    $region5: #{tpu_custom_call.1} parent=1 // loop_body
      %s17 = ssub.s32 %s12, 1
      %s18 = ssub.s32 %s12, 2
      %s25 = sadd.s32 1, %s20
      %p26 = scmp.ge.s32.totalorder %s25, 1
      %s27 = scalar_select %p26, 0, %s25
      %s28 = sadd.s32 1, %s19
      %s29 = scalar_select %p26, %s28, %s19
      %p30 = scmp.ge.s32.totalorder %s29, 2
      %s31 = scalar_select %p30, 0, %s29
      %s32 = ssub.s32 %s19, %s31
      %p33 = scmp.eq.s32.totalorder %s32, 0
      %s35 = sadd.s32 %s34, 1
      %s36 = scalar_select %p33, %s34, %s35
      %p39 = pneg %p33
      %p40 = scmp.eq.s32.totalorder %s12, 1
      %p41 = por %p39, %p40
      %p42 = scmp.ne.s32.totalorder %s34, %s37
      %p43 = scmp.eq.s32.totalorder %s12, 0
      %p44 = por %p42, %p43
      %p45 = scmp.ne.s32.totalorder %s34, %s37
      %p46 = scmp.eq.s32.totalorder %s17, 1
      %p47 = por %p45, %p46
      %p48 = scmp.ne.s32.totalorder %s37, %s38
      %p49 = scmp.eq.s32.totalorder %s17, 0
      %p50 = por %p48, %p49
      %p51 = scmp.ne.s32.totalorder %s37, %s38
      %p52 = scmp.eq.s32.totalorder %s18, 1
      %p53 = por %p51, %p52
      %p55 = scmp.ne.s32.totalorder %s38, %s54
      %p56 = scmp.eq.s32.totalorder %s18, 0
      %p57 = por %p55, %p56
      %s59 = sadd.s32 %s58, 1
      %p62 = scmp.eq.s32.totalorder %s12, 1
      %p63 = scmp.ne.s32.totalorder %s58, %s60
      %p64 = scmp.eq.s32.totalorder %s12, 0
      %p65 = por %p63, %p64
      %p66 = scmp.ne.s32.totalorder %s58, %s60
      %p67 = scmp.eq.s32.totalorder %s17, 1
      %p68 = por %p66, %p67
      %p69 = scmp.ne.s32.totalorder %s60, %s61
      %p70 = scmp.eq.s32.totalorder %s17, 0
      %p71 = por %p69, %p70
      %p72 = scmp.ne.s32.totalorder %s60, %s61
      %p73 = scmp.eq.s32.totalorder %s18, 1
      %p74 = por %p72, %p73
      %p76 = scmp.ne.s32.totalorder %s61, %s75
      %p77 = scmp.eq.s32.totalorder %s18, 0
      %p78 = por %p76, %p77
      %s80 = sadd.s32 %s79, 1
      %p83 = scmp.eq.s32.totalorder %s12, 1
      %p84 = scmp.ne.s32.totalorder %s79, %s81
      %p85 = scmp.eq.s32.totalorder %s12, 0
      %p86 = por %p84, %p85
      %p87 = scmp.ne.s32.totalorder %s79, %s81
      %p88 = scmp.eq.s32.totalorder %s17, 1
      %p89 = por %p87, %p88
      %p90 = scmp.ne.s32.totalorder %s81, %s82
      %p91 = scmp.eq.s32.totalorder %s17, 0
      %p92 = por %p90, %p91
      %p93 = scmp.ne.s32.totalorder %s81, %s82
      %p94 = scmp.eq.s32.totalorder %s18, 1
      %p95 = por %p93, %p94
      %p97 = scmp.ne.s32.totalorder %s82, %s96
      %p98 = scmp.eq.s32.totalorder %s18, 0
      %p99 = por %p97, %p98
      %s100 = ssub.s32 %s19, %s31
      %s101 = ssub.s32 %s20, %s27
      %s102 = sor.u32 %s100, %s101
      %p103 = scmp.eq.s32.totalorder %s102, 0
      %s105 = sadd.s32 %s104, 1
      %s106 = scalar_select %p103, %s104, %s105
      %p109 = pneg %p103
      %p110 = scmp.eq.s32.totalorder %s12, 1
      %p111 = por %p109, %p110
      %p112 = scmp.ne.s32.totalorder %s104, %s107
      %p113 = scmp.eq.s32.totalorder %s12, 0
      %p114 = por %p112, %p113
      %p115 = scmp.ne.s32.totalorder %s104, %s107
      %p116 = scmp.eq.s32.totalorder %s17, 1
      %p117 = por %p115, %p116
      %p118 = scmp.ne.s32.totalorder %s107, %s108
      %p119 = scmp.eq.s32.totalorder %s17, 0
      %p120 = por %p118, %p119
      %p121 = scmp.ne.s32.totalorder %s107, %s108
      %p122 = scmp.eq.s32.totalorder %s18, 1
      %p123 = por %p121, %p122
      %p125 = scmp.ne.s32.totalorder %s108, %s124
      %p126 = scmp.eq.s32.totalorder %s18, 0
      %p127 = por %p125, %p126
      %p128 = scmp.le.s32.totalorder 1, %s12
      %p129 = scmp.lt.s32.totalorder %s12, 3
      %p130 = pnand %p128, %p129
      %p131 = pneg %p130
      // Predicated region
      $region9: #{tpu_custom_call.1} parent=5 // pred_check
        _
      $region10: #{tpu_custom_call.1} parent=5 // pred_check_branch
        %133 = sbr.rel (%p130) target = $region12
      $region11: #{tpu_custom_call.1} parent=5 // pred_region
        %s134 = ssub.s32 %s12, 1
        // Predicated region
        $region13: #{tpu_custom_call.1} parent=11 // pred_check
          %p135 = pneg %p71
        $region14: #{tpu_custom_call.1} parent=11 // pred_check_branch
          %137 = sbr.rel (%p135) target = $region16
        $region15: #{tpu_custom_call.1} parent=11 // pred_region
          _
        $region16: #{tpu_custom_call.1} parent=11 // pred_fallthru
          _
        // Predicated region
        $region17: #{tpu_custom_call.1} parent=11 // pred_check
          %p138 = pneg %p92
        $region18: #{tpu_custom_call.1} parent=11 // pred_check_branch
          %140 = sbr.rel (%p138) target = $region20
        $region19: #{tpu_custom_call.1} parent=11 // pred_region
          _
        $region20: #{tpu_custom_call.1} parent=11 // pred_fallthru
          _
      $region12: #{tpu_custom_call.1} parent=5 // pred_fallthru
        _
      %p141 = scmp.lt.s32.totalorder %s12, 2
      // Predicated region
      $region21: #{tpu_custom_call.1} parent=5 // pred_check
        %p142 = pneg %p141
      $region22: #{tpu_custom_call.1} parent=5 // pred_check_branch
        %144 = sbr.rel (%p142) target = $region24
      $region23: #{tpu_custom_call.1} parent=5 // pred_region
        // Predicated region
        $region25: #{tpu_custom_call.1} parent=23 // pred_check
          %p145 = pneg %p44
        $region26: #{tpu_custom_call.1} parent=23 // pred_check_branch
          %147 = sbr.rel (%p145) target = $region28
        $region27: #{tpu_custom_call.1} parent=23 // pred_region
          %p148 = scmp.lt.s32.totalorder %s19, 1
          %s149 = scalar_select %p148, %s19, 1
          %s150 = smul.addr %s149, 3
          %s151 = smul.addr %s150, 4
          %s152 = scalar_lea.vmem %s0, %s151
        $region28: #{tpu_custom_call.1} parent=23 // pred_fallthru
          _
      $region24: #{tpu_custom_call.1} parent=5 // pred_fallthru
        _
      %p153 = scmp.le.s32.totalorder 1, %s12
      %p154 = scmp.lt.s32.totalorder %s12, 3
      %p155 = pnand %p153, %p154
      %p156 = pneg %p155
      // Predicated region
      $region29: #{tpu_custom_call.1} parent=5 // pred_check
        _
      $region30: #{tpu_custom_call.1} parent=5 // pred_check_branch
        %158 = sbr.rel (%p155) target = $region32
      $region31: #{tpu_custom_call.1} parent=5 // pred_region
        %s159 = ssub.s32 %s12, 1
        %p160 = scmp.lt.s32.totalorder %s21, 1
        %s161 = scalar_select %p160, %s21, 1
        %s162 = smul.addr %s161, 3
        %s163 = smul.addr %s162, 4
        %s164 = scalar_lea.vmem %s0, %s163
        %p165 = pneg %p50
        %p166 = pneg %p47
        %p167 = pneg %p71
        %p168 = pneg %p68
        %p169 = pneg %p92
        %p170 = pneg %p89
        %p171 = pneg %p120
        %p172 = pneg %p117
        %s173 = sand.u32 %s107, 1
        %s174 = scalar_lea.sflag [#allocation3], %s173
        %s175 = sand.u32 %s107, 1
        %s176 = smul.addr %s175, 64
        %s177 = scalar_lea.vmem [#allocation2], %s176
        %p178 = scmp.lt.s32.totalorder %s21, 1
        %s179 = scalar_select %p178, %s21, 1
        %s180 = smul.addr %s179, 3
        %s181 = smul.addr %s180, 4
        %s182 = scalar_lea.vmem %s0, %s181
        %s183 = smul.u32 2, %s22
        %v184 = vlaneseq
        %v185 = vand.u32 %v184, 127
        %v186 = vadd.s32 %v185, 128
        %vm187 = vcmp.lt.s32.totalorder %v185, 0
        %v188 = vsub.s32 0, %v185
        %v189 = vsel %vm187, %v188, %v185
        %v190 = vshrl.u32 %v189, 4
        %v191 = vand.u32 %v189, 15
        %v192 = vsub.s32 0, %v191
        %v193 = vsel %vm187, %v192, %v191
        %vm194 = vcmp.lt.s32.totalorder %v186, 0
        %v195 = vsub.s32 0, %v186
        %v196 = vsel %vm194, %v195, %v186
        %v197 = vshrl.u32 %v196, 4
        %v198 = vand.u32 %v196, 15
        %v199 = vsub.s32 0, %v198
        %v200 = vsel %vm194, %v199, %v198
        %vm201 = vcmp.ne.s32.totalorder %v193, 0
        %vm202 = vcmp.ne.s32.totalorder %v200, 0
        %vm203 = vcmp.lt.s32.totalorder %v193, 0
        %vm204 = vcmp.lt.s32.totalorder %v200, 0
        %vm205 = vmand %vm203, %vm201
        %vm206 = vmand %vm204, %vm202
        %v207 = vadd.s32 %v193, 16
        %v208 = vadd.s32 %v200, 16
        %v209 = vsel %vm205, %v207, %v193
        %v210 = vsel %vm206, %v208, %v200
        %v211 = vld [vmem:[%s182] sm:$0xff]
        %v212 = vld [vmem:[%s1] sm:$0xff]
        %v213 = vld [vmem:[%s1 + $0x8] sm:$0xff]
        %v214 = vld [vmem:[%s1 + $0x10] sm:$0xff]
        %v215 = vld [vmem:[%s1 + $0x18] sm:$0xff]
        %v216 = vld [vmem:[%s182 + $0x8] sm:$0xf]
        %vm217 = vcmp.lt.s32.totalorder %v209, 15
        %vm218 = vcmp.lt.s32.totalorder %v210, 15
        %v219 = vsel %vm217, 1, 0
        %v220 = vsel %vm218, 1, 0
        %vm221 = vcmp.eq.s32.totalorder %v219, 1
        %vm222 = vcmp.eq.s32.totalorder %v220, 1
        %225 = vst [vmem:[#allocation1] ss:$2 sm:$0xff] %v211
        %s226 = scalar_lea.vmem [#allocation1], 16
        %227 = vst [vmem:[%s226] ss:$2 sm:$0xff] %v216
        %v228 = vld.sshfl [vmem:[#allocation1] sm:$0xff pattern:$0x75316420]
        %v229 = vld.sshfl [vmem:[#allocation1 + $0x8] sm:$0xff pattern:$0x75316420]
        %v230 = vld.sshfl [vmem:[#allocation1 + $0x10] sm:$0xff pattern:$0x75316420]
        %231 = vrot.lane.b32.xlu0 %v228, 127
        %v232 = vpop.permute.xlu0 %231
        %233 = vrot.lane.b32.xlu0 %v229, 127
        %v234 = vpop.permute.xlu0 %233
        %235 = vrot.lane.b32.xlu0 %v230, 127
        %v236 = vpop.permute.xlu0 %235
        %vm237 = vcmask 1039360
        %v238 = vsel %vm237, %v232, %v234
        %v239 = vsel %vm237, %v234, %v236
        %v242 = vsel %vm221, %v238, 0.0
        %v243 = vsel %vm222, %v239, 0.0
        %s244 = scalar_lea.vmem %s1, 32
        %v245 = vld [vmem:[%s244] sm:$0xff]
        %v246 = vld [vmem:[%s244 + $0x8] sm:$0xff]
        %v247 = vld [vmem:[%s244 + $0x10] sm:$0xff]
        %v248 = vld [vmem:[%s244 + $0x18] sm:$0xff]
        %vm249 = vcmask 31744
        %v251 = vsel %vm249, %v245, 0
        %v254 = vsel %vm249, %v246, 0
        %v257 = vsel %vm249, %v247, 0
        %v260 = vsel %vm249, %v248, 0
        %vm262 = vcmask 1043456
        %v264 = vsel %vm262, %v242, 0
        %v267 = vsel %vm262, %v243, 0
        %269 = vmatpush.msra.mxu0 0.0
        %270 = vmatpush.msra.mxu0 0.0
        %271 = vmatpush.msra.mxu0 0.0
        %272 = vmatpush.msra.mxu0 0.0
        %273 = vmatpush.msra.mxu0 0.0
        %274 = vmatpush.msra.mxu0 0.0
        %275 = vmatpush.msra.mxu0 0.0
        %276 = vmatpush.msra.mxu0 0.0
        %277 = vmatpush.msra.mxu0 0.0
        %278 = vmatpush.msra.mxu0 0.0
        %279 = vmatpush.msra.mxu0 0.0
        %280 = vmatpush.msra.mxu0 0.0
        %281 = vmatpush.msra.mxu0 0.0
        %282 = vmatpush.msra.mxu0 0.0
        %283 = vmatpush.msra.mxu0 0.0
        %284 = vmatpush.msra.mxu0 %v264
        %285 = vmatmul.f32.gmra.mxu0 %v251
        %v286 = vpop.f32.mrf.mxu0
        %v287 = vadd.f32 0.0, %v286
        %288 = vmatmul.f32.gmra.mxu0 %v254
        %v289 = vpop.f32.mrf.mxu0
        %v290 = vadd.f32 0.0, %v289
        %291 = vmatmul.f32.gmra.mxu0 %v257
        %v292 = vpop.f32.mrf.mxu0
        %v293 = vadd.f32 0.0, %v292
        %294 = vmatmul.f32.gmra.mxu0 %v260
        %v295 = vpop.f32.mrf.mxu0
        %v296 = vadd.f32 0.0, %v295
        %297 = vdwg.mxu0
        %298 = vmatpush.msra.mxu0 0.0
        %299 = vmatpush.msra.mxu0 0.0
        %300 = vmatpush.msra.mxu0 0.0
        %301 = vmatpush.msra.mxu0 0.0
        %302 = vmatpush.msra.mxu0 0.0
        %303 = vmatpush.msra.mxu0 0.0
        %304 = vmatpush.msra.mxu0 0.0
        %305 = vmatpush.msra.mxu0 0.0
        %306 = vmatpush.msra.mxu0 0.0
        %307 = vmatpush.msra.mxu0 0.0
        %308 = vmatpush.msra.mxu0 0.0
        %309 = vmatpush.msra.mxu0 0.0
        %310 = vmatpush.msra.mxu0 0.0
        %311 = vmatpush.msra.mxu0 0.0
        %312 = vmatpush.msra.mxu0 0.0
        %313 = vmatpush.msra.mxu0 %v267
        %314 = vmatmul.f32.gmra.mxu0 %v251
        %v315 = vpop.f32.mrf.mxu0
        %v316 = vadd.f32 0.0, %v315
        %317 = vmatmul.f32.gmra.mxu0 %v254
        %v318 = vpop.f32.mrf.mxu0
        %v319 = vadd.f32 0.0, %v318
        %320 = vmatmul.f32.gmra.mxu0 %v257
        %v321 = vpop.f32.mrf.mxu0
        %v322 = vadd.f32 0.0, %v321
        %323 = vmatmul.f32.gmra.mxu0 %v260
        %v324 = vpop.f32.mrf.mxu0
        %v325 = vadd.f32 0.0, %v324
        %326 = vdwg.mxu0
        %327 = vst [vmem:[#allocation1] ss:$2 sm:$0xff] %v211
        %v328 = vld.sshfl [vmem:[#allocation1] sm:$0xff pattern:$0x75316420]
        %v329 = vld.sshfl [vmem:[#allocation1 + $0x8] sm:$0xff pattern:$0x75316420]
        %v331 = vsel %vm249, %v212, 0
        %v334 = vsel %vm249, %v213, 0
        %v337 = vsel %vm249, %v214, 0
        %v340 = vsel %vm249, %v215, 0
        %v342 = vsel %vm262, %v328, 0
        %v344 = vsel %vm262, %v329, 0
        %346 = vmatpush.msra.mxu0 0.0
        %347 = vmatpush.msra.mxu0 0.0
        %348 = vmatpush.msra.mxu0 0.0
        %349 = vmatpush.msra.mxu0 0.0
        %350 = vmatpush.msra.mxu0 0.0
        %351 = vmatpush.msra.mxu0 0.0
        %352 = vmatpush.msra.mxu0 0.0
        %353 = vmatpush.msra.mxu0 0.0
        %354 = vmatpush.msra.mxu0 0.0
        %355 = vmatpush.msra.mxu0 0.0
        %356 = vmatpush.msra.mxu0 0.0
        %357 = vmatpush.msra.mxu0 0.0
        %358 = vmatpush.msra.mxu0 0.0
        %359 = vmatpush.msra.mxu0 0.0
        %360 = vmatpush.msra.mxu0 0.0
        %361 = vmatpush.msra.mxu0 %v342
        %362 = vmatmul.f32.gmra.mxu0 %v331
        %v363 = vpop.f32.mrf.mxu0
        %v364 = vadd.f32 %v287, %v363
        %365 = vmatmul.f32.gmra.mxu0 %v334
        %v366 = vpop.f32.mrf.mxu0
        %v367 = vadd.f32 %v290, %v366
        %368 = vmatmul.f32.gmra.mxu0 %v337
        %v369 = vpop.f32.mrf.mxu0
        %v370 = vadd.f32 %v293, %v369
        %371 = vmatmul.f32.gmra.mxu0 %v340
        %v372 = vpop.f32.mrf.mxu0
        %v373 = vadd.f32 %v296, %v372
        %374 = vdwg.mxu0
        %375 = vmatpush.msra.mxu0 0.0
        %376 = vmatpush.msra.mxu0 0.0
        %377 = vmatpush.msra.mxu0 0.0
        %378 = vmatpush.msra.mxu0 0.0
        %379 = vmatpush.msra.mxu0 0.0
        %380 = vmatpush.msra.mxu0 0.0
        %381 = vmatpush.msra.mxu0 0.0
        %382 = vmatpush.msra.mxu0 0.0
        %383 = vmatpush.msra.mxu0 0.0
        %384 = vmatpush.msra.mxu0 0.0
        %385 = vmatpush.msra.mxu0 0.0
        %386 = vmatpush.msra.mxu0 0.0
        %387 = vmatpush.msra.mxu0 0.0
        %388 = vmatpush.msra.mxu0 0.0
        %389 = vmatpush.msra.mxu0 0.0
        %390 = vmatpush.msra.mxu0 %v344
        %391 = vmatmul.f32.gmra.mxu0 %v331
        %v392 = vpop.f32.mrf.mxu0
        %v393 = vadd.f32 %v316, %v392
        %394 = vmatmul.f32.gmra.mxu0 %v334
        %v395 = vpop.f32.mrf.mxu0
        %v396 = vadd.f32 %v319, %v395
        %397 = vmatmul.f32.gmra.mxu0 %v337
        %v398 = vpop.f32.mrf.mxu0
        %v399 = vadd.f32 %v322, %v398
        %400 = vmatmul.f32.gmra.mxu0 %v340
        %v401 = vpop.f32.mrf.mxu0
        %v402 = vadd.f32 %v325, %v401
        %403 = vdwg.mxu0
        %v404 = vld [vmem:[%s182] sm:$0xff]
        %v405 = vld [vmem:[%s182 + $0x8] sm:$0xf]
        %s406 = scalar_lea.vmem %s1, 64
        %v407 = vld [vmem:[%s406] sm:$0xff]
        %v408 = vld [vmem:[%s406 + $0x8] sm:$0xff]
        %v409 = vld [vmem:[%s406 + $0x10] sm:$0xff]
        %v410 = vld [vmem:[%s406 + $0x18] sm:$0xff]
        %413 = vst [vmem:[#allocation1] ss:$2 sm:$0xff] %v404
        %s414 = scalar_lea.vmem [#allocation1], 16
        %415 = vst [vmem:[%s414] ss:$2 sm:$0xff] %v405
        %v416 = vld.sshfl [vmem:[#allocation1] sm:$0xff pattern:$0x75316420]
        %v417 = vld.sshfl [vmem:[#allocation1 + $0x8] sm:$0xff pattern:$0x75316420]
        %v418 = vld.sshfl [vmem:[#allocation1 + $0x10] sm:$0xff pattern:$0x75316420]
        %419 = vrot.lane.b32.xlu0 %v416, 112
        %v420 = vpop.permute.xlu0 %419
        %421 = vrot.lane.b32.xlu0 %v417, 112
        %v422 = vpop.permute.xlu0 %421
        %423 = vrot.lane.b32.xlu0 %v418, 112
        %v424 = vpop.permute.xlu0 %423
        %vm425 = vcmask 916480
        %v426 = vsel %vm425, %v420, %v422
        %v427 = vsel %vm425, %v422, %v424
        %v429 = vsel %vm249, %v407, 0
        %v432 = vsel %vm249, %v408, 0
        %v435 = vsel %vm249, %v409, 0
        %v438 = vsel %vm249, %v410, 0
        %v440 = vsel %vm262, %v426, 0
        %v442 = vsel %vm262, %v427, 0
        %444 = vmatpush.msra.mxu0 0.0
        %445 = vmatpush.msra.mxu0 0.0
        %446 = vmatpush.msra.mxu0 0.0
        %447 = vmatpush.msra.mxu0 0.0
        %448 = vmatpush.msra.mxu0 0.0
        %449 = vmatpush.msra.mxu0 0.0
        %450 = vmatpush.msra.mxu0 0.0
        %451 = vmatpush.msra.mxu0 0.0
        %452 = vmatpush.msra.mxu0 0.0
        %453 = vmatpush.msra.mxu0 0.0
        %454 = vmatpush.msra.mxu0 0.0
        %455 = vmatpush.msra.mxu0 0.0
        %456 = vmatpush.msra.mxu0 0.0
        %457 = vmatpush.msra.mxu0 0.0
        %458 = vmatpush.msra.mxu0 0.0
        %459 = vmatpush.msra.mxu0 %v440
        %460 = vmatmul.f32.gmra.mxu0 %v429
        %v461 = vpop.f32.mrf.mxu0
        %v462 = vadd.f32 0.0, %v461
        %463 = vmatmul.f32.gmra.mxu0 %v432
        %v464 = vpop.f32.mrf.mxu0
        %v465 = vadd.f32 0.0, %v464
        %466 = vmatmul.f32.gmra.mxu0 %v435
        %v467 = vpop.f32.mrf.mxu0
        %v468 = vadd.f32 0.0, %v467
        %469 = vmatmul.f32.gmra.mxu0 %v438
        %v470 = vpop.f32.mrf.mxu0
        %v471 = vadd.f32 0.0, %v470
        %472 = vdwg.mxu0
        %473 = vmatpush.msra.mxu0 0.0
        %474 = vmatpush.msra.mxu0 0.0
        %475 = vmatpush.msra.mxu0 0.0
        %476 = vmatpush.msra.mxu0 0.0
        %477 = vmatpush.msra.mxu0 0.0
        %478 = vmatpush.msra.mxu0 0.0
        %479 = vmatpush.msra.mxu0 0.0
        %480 = vmatpush.msra.mxu0 0.0
        %481 = vmatpush.msra.mxu0 0.0
        %482 = vmatpush.msra.mxu0 0.0
        %483 = vmatpush.msra.mxu0 0.0
        %484 = vmatpush.msra.mxu0 0.0
        %485 = vmatpush.msra.mxu0 0.0
        %486 = vmatpush.msra.mxu0 0.0
        %487 = vmatpush.msra.mxu0 0.0
        %488 = vmatpush.msra.mxu0 %v442
        %489 = vmatmul.f32.gmra.mxu0 %v429
        %v490 = vpop.f32.mrf.mxu0
        %v491 = vadd.f32 0.0, %v490
        %492 = vmatmul.f32.gmra.mxu0 %v432
        %v493 = vpop.f32.mrf.mxu0
        %v494 = vadd.f32 0.0, %v493
        %495 = vmatmul.f32.gmra.mxu0 %v435
        %v496 = vpop.f32.mrf.mxu0
        %v497 = vadd.f32 0.0, %v496
        %498 = vmatmul.f32.gmra.mxu0 %v438
        %v499 = vpop.f32.mrf.mxu0
        %v500 = vadd.f32 0.0, %v499
        %501 = vdwg.mxu0
        %v502 = vadd.f32 %v364, %v462
        %v503 = vadd.f32 %v393, %v491
        %v504 = vadd.f32 %v367, %v465
        %v505 = vadd.f32 %v396, %v494
        %v506 = vadd.f32 %v370, %v468
        %v507 = vadd.f32 %v399, %v497
        %v508 = vadd.f32 %v373, %v471
        %v509 = vadd.f32 %v402, %v500
        %v510 = vld [vmem:[%s182] sm:$0xff]
        %v511 = vld [vmem:[%s182 + $0x8] sm:$0xf]
        %514 = vst [vmem:[#allocation1] ss:$2 sm:$0xff] %v510
        %s515 = scalar_lea.vmem [#allocation1], 16
        %516 = vst [vmem:[%s515] ss:$2 sm:$0xff] %v511
        %v517 = vld.sshfl [vmem:[#allocation1] sm:$0xff pattern:$0x75316420]
        %v518 = vld.sshfl [vmem:[#allocation1 + $0x8] sm:$0xff pattern:$0x75316420]
        %v519 = vld.sshfl [vmem:[#allocation1 + $0x10] sm:$0xff pattern:$0x75316420]
        %520 = vrot.lane.b32.xlu0 %v517, 111
        %v521 = vpop.permute.xlu0 %520
        %522 = vrot.lane.b32.xlu0 %v518, 111
        %v523 = vpop.permute.xlu0 %522
        %524 = vrot.lane.b32.xlu0 %v519, 111
        %v525 = vpop.permute.xlu0 %524
        %vm526 = vcmask 908288
        %v527 = vsel %vm526, %v521, %v523
        %v528 = vsel %vm526, %v523, %v525
        %v531 = vsel %vm221, %v527, 0.0
        %v532 = vsel %vm222, %v528, 0.0
        %s533 = scalar_lea.vmem %s1, 96
        %v534 = vld [vmem:[%s533] sm:$0xff]
        %v535 = vld [vmem:[%s533 + $0x8] sm:$0xff]
        %v536 = vld [vmem:[%s533 + $0x10] sm:$0xff]
        %v537 = vld [vmem:[%s533 + $0x18] sm:$0xff]
        %v539 = vsel %vm249, %v534, 0
        %v542 = vsel %vm249, %v535, 0
        %v545 = vsel %vm249, %v536, 0
        %v548 = vsel %vm249, %v537, 0
        %v551 = vsel %vm262, %v531, 0
        %v554 = vsel %vm262, %v532, 0
        %556 = vmatpush.msra.mxu0 0.0
        %557 = vmatpush.msra.mxu0 0.0
        %558 = vmatpush.msra.mxu0 0.0
        %559 = vmatpush.msra.mxu0 0.0
        %560 = vmatpush.msra.mxu0 0.0
        %561 = vmatpush.msra.mxu0 0.0
        %562 = vmatpush.msra.mxu0 0.0
        %563 = vmatpush.msra.mxu0 0.0
        %564 = vmatpush.msra.mxu0 0.0
        %565 = vmatpush.msra.mxu0 0.0
        %566 = vmatpush.msra.mxu0 0.0
        %567 = vmatpush.msra.mxu0 0.0
        %568 = vmatpush.msra.mxu0 0.0
        %569 = vmatpush.msra.mxu0 0.0
        %570 = vmatpush.msra.mxu0 0.0
        %571 = vmatpush.msra.mxu0 %v551
        %572 = vmatmul.f32.gmra.mxu0 %v539
        %v573 = vpop.f32.mrf.mxu0
        %v574 = vadd.f32 0.0, %v573
        %575 = vmatmul.f32.gmra.mxu0 %v542
        %v576 = vpop.f32.mrf.mxu0
        %v577 = vadd.f32 0.0, %v576
        %578 = vmatmul.f32.gmra.mxu0 %v545
        %v579 = vpop.f32.mrf.mxu0
        %v580 = vadd.f32 0.0, %v579
        %581 = vmatmul.f32.gmra.mxu0 %v548
        %v582 = vpop.f32.mrf.mxu0
        %v583 = vadd.f32 0.0, %v582
        %584 = vdwg.mxu0
        %585 = vmatpush.msra.mxu0 0.0
        %586 = vmatpush.msra.mxu0 0.0
        %587 = vmatpush.msra.mxu0 0.0
        %588 = vmatpush.msra.mxu0 0.0
        %589 = vmatpush.msra.mxu0 0.0
        %590 = vmatpush.msra.mxu0 0.0
        %591 = vmatpush.msra.mxu0 0.0
        %592 = vmatpush.msra.mxu0 0.0
        %593 = vmatpush.msra.mxu0 0.0
        %594 = vmatpush.msra.mxu0 0.0
        %595 = vmatpush.msra.mxu0 0.0
        %596 = vmatpush.msra.mxu0 0.0
        %597 = vmatpush.msra.mxu0 0.0
        %598 = vmatpush.msra.mxu0 0.0
        %599 = vmatpush.msra.mxu0 0.0
        %600 = vmatpush.msra.mxu0 %v554
        %601 = vmatmul.f32.gmra.mxu0 %v539
        %v602 = vpop.f32.mrf.mxu0
        %v603 = vadd.f32 0.0, %v602
        %604 = vmatmul.f32.gmra.mxu0 %v542
        %v605 = vpop.f32.mrf.mxu0
        %v606 = vadd.f32 0.0, %v605
        %607 = vmatmul.f32.gmra.mxu0 %v545
        %v608 = vpop.f32.mrf.mxu0
        %v609 = vadd.f32 0.0, %v608
        %610 = vmatmul.f32.gmra.mxu0 %v548
        %v611 = vpop.f32.mrf.mxu0
        %v612 = vadd.f32 0.0, %v611
        %613 = vdwg.mxu0
        %v614 = vadd.f32 %v502, %v574
        %v615 = vadd.f32 %v503, %v603
        %v616 = vadd.f32 %v504, %v577
        %v617 = vadd.f32 %v505, %v606
        %v618 = vadd.f32 %v506, %v580
        %v619 = vadd.f32 %v507, %v609
        %v620 = vadd.f32 %v508, %v583
        %v621 = vadd.f32 %v509, %v612
        %v622 = vld [vmem:[%s2] sm:$0xff]
        %v623 = vld [vmem:[%s2 + $0x8] sm:$0xff]
        %v624 = vld [vmem:[%s2 + $0x10] sm:$0xff]
        %v625 = vld [vmem:[%s2 + $0x18] sm:$0xff]
        %627 = vset.pattern.permute.xlu0 0
        %628 = vperm.xlu0 %627, %v622
        %v629 = vpop.permute.xlu0 %628
        %632 = vset.pattern.permute.xlu0 0
        %633 = vperm.xlu0 %632, %v623
        %v634 = vpop.permute.xlu0 %633
        %637 = vset.pattern.permute.xlu0 0
        %638 = vperm.xlu0 %637, %v624
        %v639 = vpop.permute.xlu0 %638
        %642 = vset.pattern.permute.xlu0 0
        %643 = vperm.xlu0 %642, %v625
        %v644 = vpop.permute.xlu0 %643
        %v646 = vadd.f32 %v614, %v629
        %v647 = vadd.f32 %v615, %v629
        %v648 = vadd.f32 %v616, %v634
        %v649 = vadd.f32 %v617, %v634
        %v650 = vadd.f32 %v618, %v639
        %v651 = vadd.f32 %v619, %v639
        %v652 = vadd.f32 %v620, %v644
        %v653 = vadd.f32 %v621, %v644
        %v654 = vmax.f32 %v646, 0.0
        %v655 = vmax.f32 %v647, 0.0
        %v656 = vmax.f32 %v648, 0.0
        %v657 = vmax.f32 %v649, 0.0
        %v658 = vmax.f32 %v650, 0.0
        %v659 = vmax.f32 %v651, 0.0
        %v660 = vmax.f32 %v652, 0.0
        %v661 = vmax.f32 %v653, 0.0
        %662 = vst [vmem:[%s177] sm:$0xff] %v654
        %663 = vst [vmem:[%s177 + $0x8] sm:$0xff] %v655
        %664 = vst [vmem:[%s177 + $0x10] sm:$0xff] %v656
        %665 = vst [vmem:[%s177 + $0x18] sm:$0xff] %v657
        %666 = vst [vmem:[%s177 + $0x20] sm:$0xff] %v658
        %667 = vst [vmem:[%s177 + $0x28] sm:$0xff] %v659
        %668 = vst [vmem:[%s177 + $0x30] sm:$0xff] %v660
        %669 = vst [vmem:[%s177 + $0x38] sm:$0xff] %v661
        %s670 = sand.u32 %s107, 1
        %s671 = scalar_lea.sflag [#allocation3], %s670
        %s672 = sand.u32 %s107, 1
        %s673 = smul.addr %s672, 64
        %s674 = scalar_lea.vmem [#allocation2], %s673
        // Predicated region
        $region33: #{tpu_custom_call.1} parent=31 // pred_check
          %p675 = pneg %p117
        $region34: #{tpu_custom_call.1} parent=31 // pred_check_branch
          %677 = sbr.rel (%p675) target = $region36
        $region35: #{tpu_custom_call.1} parent=31 // pred_region
          %s678 = smul.u32 2, %s22
          %680 = vsyncadd %s671, 0
          %s681 = smul.addr %s21, 8
          %s682 = sadd.s32 %s678, %s681
          %s683 = smul.addr %s682, 8
          %s684 = scalar_lea.hbm %s3, %s683
          %s685 = sshll.u32 %s674, 4
          %s686 = int_to_ptr.vmem [resolvable:$true] %s685
          %s687 = sshll.u32 %s684, 4
          %s688 = int_to_ptr.hbm [resolvable:$true] %s687
          %693 = dma.vmem_to_hbm [thread:$0]  %s686, 1024, %s688, %s671, 256, 256, 16
        $region36: #{tpu_custom_call.1} parent=31 // pred_fallthru
          _
      $region32: #{tpu_custom_call.1} parent=5 // pred_fallthru
        _
      %p694 = scmp.le.s32.totalorder 2, %s12
      // Predicated region
      $region37: #{tpu_custom_call.1} parent=5 // pred_check
        %p695 = pneg %p694
      $region38: #{tpu_custom_call.1} parent=5 // pred_check_branch
        %697 = sbr.rel (%p695) target = $region40
      $region39: #{tpu_custom_call.1} parent=5 // pred_region
        %s698 = ssub.s32 %s12, 2
        // Predicated region
        $region41: #{tpu_custom_call.1} parent=39 // pred_check
          %p699 = pneg %p123
        $region42: #{tpu_custom_call.1} parent=39 // pred_check_branch
          %701 = sbr.rel (%p699) target = $region44
        $region43: #{tpu_custom_call.1} parent=39 // pred_region
          %s702 = sand.u32 %s108, 1
          %s703 = scalar_lea.sflag [#allocation3], %s702
          %s704 = sand.u32 %s108, 1
          %s705 = smul.addr %s704, 64
          %s706 = scalar_lea.vmem [#allocation2], %s705
          %708 = dma.done %s703, 1024
        $region44: #{tpu_custom_call.1} parent=39 // pred_fallthru
          _
      $region40: #{tpu_custom_call.1} parent=5 // pred_fallthru
        _
    $region6: #{tpu_custom_call.1} parent=1 // loop_footer
      %s16 = sadd.s32 1, %s12
    $region7: #{tpu_custom_call.1} parent=1 // loop_footer_branch
      %11 = sbr.rel target = $region3
    $region8: #{tpu_custom_call.1} parent=1 // loop_exit
      _
    %709 = vsyncpa [#allocation3], 1
    %s710 = scalar_lea.sflag [#allocation3], 1
    %711 = vsyncpa %s710, 1

</llo_original>
